<compile_context>
chip_gen: v7x
topology: tpu7x:2x2x1
jax: 0.10.0
libtpu: 0.0.40
codegen_flags: <defaults>
</compile_context>

<pallas_src>
import collections

import jax
import jax.numpy as jnp
from jax.experimental import pallas as pl
from jax.experimental.pallas import tpu as pltpu

N_PAD = 16        # num_nodes (10) padded up to a multiple of 8 (sublane)
F_PAD = 32        # per-snapshot feature width = hidden_channels; in/out padded into it
NUM_LAYERS = 5


def pressure_gnn_kernel(a_ref, x_ref, w_ref, b_ref, out_ref):
    # a_ref  : (N_PAD, N_PAD)                 normalized adjacency, zero-padded
    # x_ref  : (N_PAD, CHUNK*F_PAD)           CHUNK snapshots packed along lanes
    # w_ref  : (5, CHUNK*F_PAD, CHUNK*F_PAD)  block-diagonal weight slab
    # b_ref  : (5, 1, CHUNK*F_PAD)            lane-tiled bias slab
    # out_ref: (N_PAD, CHUNK*F_PAD)
    a = a_ref[...]
    h = x_ref[...]
    for i in range(NUM_LAYERS):                       # static unroll: 5 layers
        hw = jnp.dot(h, w_ref[i], preferred_element_type=jnp.float32)
        h = jnp.dot(a, hw, preferred_element_type=jnp.float32) + b_ref[i]
        if i < NUM_LAYERS - 1:
            h = jnp.maximum(h, 0.0)
    out_ref[...] = h


def build_norm_adj(edge_index, num_nodes):
    """Dense D^-1/2 (A + I) D^-1/2, message flow src -> dst (aggregate at dst).
    Duplicate edges are summed, matching PyG multi-edge behavior."""
    src, dst = edge_index[0], edge_index[1]
    m = jnp.zeros((num_nodes, num_nodes), jnp.float32)
    m = m.at[dst, src].add(1.0)
    m = m + jnp.eye(num_nodes, dtype=jnp.float32)
    deg = jnp.sum(m, axis=1)
    dinv = jnp.where(deg > 0, 1.0 / jnp.sqrt(deg), 0.0)
    return dinv[:, None] * m * dinv[None, :]


def pad_to(x, shape):
    return jnp.pad(x, [(0, t - s) for s, t in zip(x.shape, shape)])


def _default_chunk():
    """Snapshots packed per grid step: match the MXU / lane width per chip."""
    try:
        kind = jax.devices()[0].device_kind.lower()
    except Exception:
        return 4
    if "v6" in kind or "v7" in kind:
        return 8      # 8 * 32 = 256 lanes -> matches the 2x256^2 MXU
    return 4          # 4 * 32 = 128 lanes -> matches 128-wide MXU (v5e and older)


PressureGNNForward = collections.namedtuple(
    "PressureGNNForward", ["pack_inputs", "run_packed", "unpack_outputs", "forward"])


def make_pressure_gnn_forward(edge_index, params, num_nodes, out_channels, chunk=None):
    """Cache graph normalization + packed/padded weights once for a fixed pipe
    topology; return packed entry points over batches of node-feature snapshots."""
    if chunk is None:
        chunk = _default_chunk()
    lanes = chunk * F_PAD

    a_p = pad_to(build_norm_adj(edge_index, num_nodes), (N_PAD, N_PAD))
    eye_c = jnp.eye(chunk, dtype=jnp.float32)
    # Block-diagonal weights: kron(I, W) has EXACT zeros off the diagonal, so
    # lane-packed snapshots cannot cross-contaminate.
    w_bd = jnp.stack([jnp.kron(eye_c, pad_to(w, (F_PAD, F_PAD)))
                      for w, _ in params])                                 # (5, lanes, lanes)
    b_tl = jnp.stack([jnp.tile(pad_to(b.reshape(1, -1), (1, F_PAD)), (1, chunk))
                      for _, b in params])                                 # (5, 1, lanes)

    def _build_call(g, single_buffer_consts):
        # Grid-invariant operands (constant index map): fetched once and kept
        # VMEM-resident; Buffered(1) drops the redundant revolving buffer.
        const_kw = {"pipeline_mode": pl.Buffered(1)} if single_buffer_consts else {}
        return pl.pallas_call(
            pressure_gnn_kernel,
            out_shape=jax.ShapeDtypeStruct((g, N_PAD, lanes), jnp.float32),
            grid_spec=pltpu.PrefetchScalarGridSpec(
                num_scalar_prefetch=0,
                grid=(g,),
                in_specs=[
                    pl.BlockSpec((N_PAD, N_PAD), lambda b: (0, 0), **const_kw),
                    pl.BlockSpec((None, N_PAD, lanes), lambda b: (b, 0, 0)),
                    pl.BlockSpec((NUM_LAYERS, lanes, lanes), lambda b: (0, 0, 0), **const_kw),
                    pl.BlockSpec((NUM_LAYERS, 1, lanes), lambda b: (0, 0, 0), **const_kw),
                ],
                out_specs=pl.BlockSpec((None, N_PAD, lanes), lambda b: (b, 0, 0)),
            ),
            compiler_params=pltpu.CompilerParams(
                dimension_semantics=("parallel",),   # v7x: shard grid steps across the 2 TCs
            ),
        )

    # Probe once (tiny grid=1 compile) whether this jax build accepts
    # single-buffered constant operands; fall back to default double-buffering.
    try:
        jax.block_until_ready(
            _build_call(1, True)(a_p, jnp.zeros((1, N_PAD, lanes), jnp.float32), w_bd, b_tl))
        single_buffer_consts = True
    except Exception:
        single_buffer_consts = False

    def _pack_inputs(x_batch):                        # (B, num_nodes, in_channels)
        b, n, c = x_batch.shape
        bp = ((b + chunk - 1) // chunk) * chunk       # bucket B to a multiple of CHUNK
        x_p = jnp.pad(x_batch.astype(jnp.float32),
                      ((0, bp - b), (0, N_PAD - n), (0, F_PAD - c)))
        g = bp // chunk
        # snapshot j of grid step g lives in lanes [j*F_PAD:(j+1)*F_PAD]
        return (x_p.reshape(g, chunk, N_PAD, F_PAD)
                   .transpose(0, 2, 1, 3)
                   .reshape(g, N_PAD, lanes))

    def _run_packed(x_packed):                        # hot path: pure pallas_call
        g = x_packed.shape[0]
        return _build_call(g, single_buffer_consts)(a_p, x_packed, w_bd, b_tl)

    def _unpack_outputs(out_packed, batch_size):
        g = out_packed.shape[0]
        y = (out_packed.reshape(g, N_PAD, chunk, F_PAD)
                       .transpose(0, 2, 1, 3)
                       .reshape(g * chunk, N_PAD, F_PAD))
        return y[:batch_size, :num_nodes, :out_channels]

    pack_inputs = jax.jit(_pack_inputs)
    run_packed = jax.jit(_run_packed)
    unpack_outputs = jax.jit(_unpack_outputs, static_argnames=("batch_size",))

    def forward(x_batch):
        """Convenience path; prefer pack_inputs once + run_packed in hot loops."""
        return unpack_outputs(run_packed(pack_inputs(x_batch)),
                              batch_size=x_batch.shape[0])

    return PressureGNNForward(pack_inputs, run_packed, unpack_outputs, forward)


def pressure_gnn_reference(x, edge_index, params):
    a = build_norm_adj(edge_index, x.shape[0])
    h = x
    for i, (w, b) in enumerate(params):
        h = a @ (h @ w) + b[None, :]
        if i < len(params) - 1:
            h = jnp.maximum(h, 0.0)
    return h


def glorot(key, fan_in, fan_out):
    limit = jnp.sqrt(6.0 / (fan_in + fan_out))
    return jax.random.uniform(key, (fan_in, fan_out), jnp.float32, -limit, limit)


if __name__ == "__main__":
    # Graph & node features from the original script.
    edge_index = jnp.array(
        [[0, 0, 1, 1, 2, 2, 3, 3, 4, 4, 5, 5, 6, 6, 7, 7, 8, 8, 9, 7],
         [1, 3, 0, 2, 1, 5, 0, 4, 3, 5, 2, 4, 3, 7, 4, 6, 5, 7, 7, 9]],
        dtype=jnp.int32)
    x0 = jnp.array(
        [[0, 0], [1, 0], [2, 0], [0, 1], [1, 1],
         [2, 1], [0, 2], [1, 2], [2, 2], [1, 3]], dtype=jnp.float32)

    in_channels, hidden, out_channels = 2, 32, 1
    num_nodes = x0.shape[0]
    dims = [(in_channels, hidden), (hidden, hidden), (hidden, hidden),
            (hidden, hidden), (hidden, out_channels)]

    key = jax.random.PRNGKey(0)
    params = []
    for fan_in, fan_out in dims:
        key, sub = jax.random.split(key)
        params.append((glorot(sub, fan_in, fan_out), jnp.zeros((fan_out,), jnp.float32)))

    # Batch of snapshots sharing the fixed pipe topology; snapshot 0 is the
    # original spec input.  B = 2*CHUNK keeps the grid length at 2 so both
    # v7x TensorCores get work (8 snapshots on v5e, 16 on v6e/v7x).
    chunk = _default_chunk()
    B = 2 * chunk
    key, sub = jax.random.split(key)
    noise = 0.1 * jax.random.normal(sub, (B - 1, num_nodes, in_channels), jnp.float32)
    x_batch = jnp.concatenate([x0[None], x0[None] + noise], axis=0)

    gnn = make_pressure_gnn_forward(edge_index, params, num_nodes, out_channels, chunk=chunk)

    x_packed = gnn.pack_inputs(x_batch)                              # data prep (once per batch)
    out_packed = jax.block_until_ready(gnn.run_packed(x_packed))     # hot path: pallas only
    out = gnn.unpack_outputs(out_packed, batch_size=B)               # downstream slice

    ref = jnp.stack([pressure_gnn_reference(x_batch[b], edge_index, params)
                     for b in range(B)])
    assert out.shape == (B, num_nodes, out_channels), out.shape
    assert jnp.allclose(out, ref, rtol=1e-4, atol=1e-5), (out, ref)

    print("KERNEL_OK")
</pallas_src>

<mosaic_0001>
module attributes {stable_mosaic.version = 11 : i64} {
  func.func @pressure_gnn_kernel(%arg0: i32, %arg1: memref<16x16xf32, #tpu.memory_space<vmem>>, %arg2: memref<1x16x128xf32, #tpu.memory_space<vmem>>, %arg3: memref<5x128x128xf32, #tpu.memory_space<vmem>>, %arg4: memref<5x1x128xf32, #tpu.memory_space<vmem>>, %arg5: memref<1x16x128xf32, #tpu.memory_space<vmem>>) attributes {dimension_semantics = [#tpu.dimension_semantics<parallel>], iteration_bounds = array<i64: 1>, scalar_prefetch = 0 : i64, scratch_operands = 0 : i64, tpu.core_type = #tpu.core_type<tc>, window_params = [{pipeline_mode = #tpu.pipeline_mode<synchronous>, transform_indices = @transform_0, window_bounds = array<i64: 16, 16>}, {transform_indices = @transform_1, window_bounds = array<i64: 1, 16, 128>}, {pipeline_mode = #tpu.pipeline_mode<synchronous>, transform_indices = @transform_2, window_bounds = array<i64: 5, 128, 128>}, {pipeline_mode = #tpu.pipeline_mode<synchronous>, transform_indices = @transform_3, window_bounds = array<i64: 5, 1, 128>}, {transform_indices = @transform_4, window_bounds = array<i64: 1, 16, 128>}]} {
    %c0 = arith.constant 0 : index
    %c0_0 = arith.constant 0 : index
    %0 = vector.load %arg1[%c0, %c0_0] : memref<16x16xf32, #tpu.memory_space<vmem>>, vector<16x16xf32>
    %c0_1 = arith.constant 0 : index
    %c0_2 = arith.constant 0 : index
    %c0_3 = arith.constant 0 : index
    %1 = vector.load %arg2[%c0_1, %c0_2, %c0_3] : memref<1x16x128xf32, #tpu.memory_space<vmem>>, vector<1x16x128xf32>
    %2 = vector.shape_cast %1 : vector<1x16x128xf32> to vector<16x128xf32>
    %c0_4 = arith.constant 0 : index
    %c0_5 = arith.constant 0 : index
    %c0_6 = arith.constant 0 : index
    %3 = vector.load %arg3[%c0_4, %c0_5, %c0_6] : memref<5x128x128xf32, #tpu.memory_space<vmem>>, vector<1x128x128xf32>
    %4 = vector.shape_cast %3 : vector<1x128x128xf32> to vector<128x128xf32>
    %cst = arith.constant dense<0.000000e+00> : vector<16x128xf32>
    %5 = tpu.matmul %2, %4, %cst {dimension_numbers = #tpu.dot_dimension_numbers<[1], [0], [0], [1], [0, 0, 1, 1], [], []>} : vector<16x128xf32>, vector<128x128xf32>, vector<16x128xf32> -> vector<16x128xf32>
    %cst_7 = arith.constant dense<0.000000e+00> : vector<16x128xf32>
    %6 = tpu.matmul %0, %5, %cst_7 {dimension_numbers = #tpu.dot_dimension_numbers<[1], [0], [0], [1], [0, 0, 1, 1], [], []>} : vector<16x16xf32>, vector<16x128xf32>, vector<16x128xf32> -> vector<16x128xf32>
    %c0_8 = arith.constant 0 : index
    %c0_9 = arith.constant 0 : index
    %c0_10 = arith.constant 0 : index
    %7 = vector.load %arg4[%c0_8, %c0_9, %c0_10] : memref<5x1x128xf32, #tpu.memory_space<vmem>>, vector<1x1x128xf32>
    %8 = vector.shape_cast %7 : vector<1x1x128xf32> to vector<1x128xf32>
    %9 = vector.broadcast %8 : vector<1x128xf32> to vector<16x128xf32>
    %10 = arith.addf %6, %9 : vector<16x128xf32>
    %cst_11 = arith.constant 0.000000e+00 : f32
    %11 = vector.broadcast %cst_11 : f32 to vector<16x128xf32>
    %12 = arith.maximumf %10, %11 : vector<16x128xf32>
    %c1 = arith.constant 1 : index
    %c0_12 = arith.constant 0 : index
    %c0_13 = arith.constant 0 : index
    %13 = vector.load %arg3[%c1, %c0_12, %c0_13] : memref<5x128x128xf32, #tpu.memory_space<vmem>>, vector<1x128x128xf32>
    %14 = vector.shape_cast %13 : vector<1x128x128xf32> to vector<128x128xf32>
    %cst_14 = arith.constant dense<0.000000e+00> : vector<16x128xf32>
    %15 = tpu.matmul %12, %14, %cst_14 {dimension_numbers = #tpu.dot_dimension_numbers<[1], [0], [0], [1], [0, 0, 1, 1], [], []>} : vector<16x128xf32>, vector<128x128xf32>, vector<16x128xf32> -> vector<16x128xf32>
    %cst_15 = arith.constant dense<0.000000e+00> : vector<16x128xf32>
    %16 = tpu.matmul %0, %15, %cst_15 {dimension_numbers = #tpu.dot_dimension_numbers<[1], [0], [0], [1], [0, 0, 1, 1], [], []>} : vector<16x16xf32>, vector<16x128xf32>, vector<16x128xf32> -> vector<16x128xf32>
    %c1_16 = arith.constant 1 : index
    %c0_17 = arith.constant 0 : index
    %c0_18 = arith.constant 0 : index
    %17 = vector.load %arg4[%c1_16, %c0_17, %c0_18] : memref<5x1x128xf32, #tpu.memory_space<vmem>>, vector<1x1x128xf32>
    %18 = vector.shape_cast %17 : vector<1x1x128xf32> to vector<1x128xf32>
    %19 = vector.broadcast %18 : vector<1x128xf32> to vector<16x128xf32>
    %20 = arith.addf %16, %19 : vector<16x128xf32>
    %cst_19 = arith.constant 0.000000e+00 : f32
    %21 = vector.broadcast %cst_19 : f32 to vector<16x128xf32>
    %22 = arith.maximumf %20, %21 : vector<16x128xf32>
    %c2 = arith.constant 2 : index
    %c0_20 = arith.constant 0 : index
    %c0_21 = arith.constant 0 : index
    %23 = vector.load %arg3[%c2, %c0_20, %c0_21] : memref<5x128x128xf32, #tpu.memory_space<vmem>>, vector<1x128x128xf32>
    %24 = vector.shape_cast %23 : vector<1x128x128xf32> to vector<128x128xf32>
    %cst_22 = arith.constant dense<0.000000e+00> : vector<16x128xf32>
    %25 = tpu.matmul %22, %24, %cst_22 {dimension_numbers = #tpu.dot_dimension_numbers<[1], [0], [0], [1], [0, 0, 1, 1], [], []>} : vector<16x128xf32>, vector<128x128xf32>, vector<16x128xf32> -> vector<16x128xf32>
    %cst_23 = arith.constant dense<0.000000e+00> : vector<16x128xf32>
    %26 = tpu.matmul %0, %25, %cst_23 {dimension_numbers = #tpu.dot_dimension_numbers<[1], [0], [0], [1], [0, 0, 1, 1], [], []>} : vector<16x16xf32>, vector<16x128xf32>, vector<16x128xf32> -> vector<16x128xf32>
    %c2_24 = arith.constant 2 : index
    %c0_25 = arith.constant 0 : index
    %c0_26 = arith.constant 0 : index
    %27 = vector.load %arg4[%c2_24, %c0_25, %c0_26] : memref<5x1x128xf32, #tpu.memory_space<vmem>>, vector<1x1x128xf32>
    %28 = vector.shape_cast %27 : vector<1x1x128xf32> to vector<1x128xf32>
    %29 = vector.broadcast %28 : vector<1x128xf32> to vector<16x128xf32>
    %30 = arith.addf %26, %29 : vector<16x128xf32>
    %cst_27 = arith.constant 0.000000e+00 : f32
    %31 = vector.broadcast %cst_27 : f32 to vector<16x128xf32>
    %32 = arith.maximumf %30, %31 : vector<16x128xf32>
    %c3 = arith.constant 3 : index
    %c0_28 = arith.constant 0 : index
    %c0_29 = arith.constant 0 : index
    %33 = vector.load %arg3[%c3, %c0_28, %c0_29] : memref<5x128x128xf32, #tpu.memory_space<vmem>>, vector<1x128x128xf32>
    %34 = vector.shape_cast %33 : vector<1x128x128xf32> to vector<128x128xf32>
    %cst_30 = arith.constant dense<0.000000e+00> : vector<16x128xf32>
    %35 = tpu.matmul %32, %34, %cst_30 {dimension_numbers = #tpu.dot_dimension_numbers<[1], [0], [0], [1], [0, 0, 1, 1], [], []>} : vector<16x128xf32>, vector<128x128xf32>, vector<16x128xf32> -> vector<16x128xf32>
    %cst_31 = arith.constant dense<0.000000e+00> : vector<16x128xf32>
    %36 = tpu.matmul %0, %35, %cst_31 {dimension_numbers = #tpu.dot_dimension_numbers<[1], [0], [0], [1], [0, 0, 1, 1], [], []>} : vector<16x16xf32>, vector<16x128xf32>, vector<16x128xf32> -> vector<16x128xf32>
    %c3_32 = arith.constant 3 : index
    %c0_33 = arith.constant 0 : index
    %c0_34 = arith.constant 0 : index
    %37 = vector.load %arg4[%c3_32, %c0_33, %c0_34] : memref<5x1x128xf32, #tpu.memory_space<vmem>>, vector<1x1x128xf32>
    %38 = vector.shape_cast %37 : vector<1x1x128xf32> to vector<1x128xf32>
    %39 = vector.broadcast %38 : vector<1x128xf32> to vector<16x128xf32>
    %40 = arith.addf %36, %39 : vector<16x128xf32>
    %cst_35 = arith.constant 0.000000e+00 : f32
    %41 = vector.broadcast %cst_35 : f32 to vector<16x128xf32>
    %42 = arith.maximumf %40, %41 : vector<16x128xf32>
    %c4 = arith.constant 4 : index
    %c0_36 = arith.constant 0 : index
    %c0_37 = arith.constant 0 : index
    %43 = vector.load %arg3[%c4, %c0_36, %c0_37] : memref<5x128x128xf32, #tpu.memory_space<vmem>>, vector<1x128x128xf32>
    %44 = vector.shape_cast %43 : vector<1x128x128xf32> to vector<128x128xf32>
    %cst_38 = arith.constant dense<0.000000e+00> : vector<16x128xf32>
    %45 = tpu.matmul %42, %44, %cst_38 {dimension_numbers = #tpu.dot_dimension_numbers<[1], [0], [0], [1], [0, 0, 1, 1], [], []>} : vector<16x128xf32>, vector<128x128xf32>, vector<16x128xf32> -> vector<16x128xf32>
    %cst_39 = arith.constant dense<0.000000e+00> : vector<16x128xf32>
    %46 = tpu.matmul %0, %45, %cst_39 {dimension_numbers = #tpu.dot_dimension_numbers<[1], [0], [0], [1], [0, 0, 1, 1], [], []>} : vector<16x16xf32>, vector<16x128xf32>, vector<16x128xf32> -> vector<16x128xf32>
    %c4_40 = arith.constant 4 : index
    %c0_41 = arith.constant 0 : index
    %c0_42 = arith.constant 0 : index
    %47 = vector.load %arg4[%c4_40, %c0_41, %c0_42] : memref<5x1x128xf32, #tpu.memory_space<vmem>>, vector<1x1x128xf32>
    %48 = vector.shape_cast %47 : vector<1x1x128xf32> to vector<1x128xf32>
    %49 = vector.broadcast %48 : vector<1x128xf32> to vector<16x128xf32>
    %50 = arith.addf %46, %49 : vector<16x128xf32>
    %c0_43 = arith.constant 0 : index
    %c0_44 = arith.constant 0 : index
    %c0_45 = arith.constant 0 : index
    %51 = vector.load %arg5[%c0_43, %c0_44, %c0_45] : memref<1x16x128xf32, #tpu.memory_space<vmem>>, vector<1x16x128xf32>
    %52 = vector.shape_cast %51 : vector<1x16x128xf32> to vector<16x128xf32>
    %53 = vector.shape_cast %50 : vector<16x128xf32> to vector<1x16x128xf32>
    tpu.vector_store %arg5[%c0_43, %c0_44, %c0_45], %53 {strides = array<i32>} : memref<1x16x128xf32, #tpu.memory_space<vmem>>, vector<1x16x128xf32>,
    return
  }
  func.func @transform_0(%arg0: i32) -> (i32, i32) {
    %c0_i32 = arith.constant 0 : i32
    %c0_i32_0 = arith.constant 0 : i32
    %c0_i32_1 = arith.constant 0 : i32
    return %c0_i32, %c0_i32_0 : i32, i32
  }
  func.func @transform_1(%arg0: i32) -> (i32, i32, i32) {
    %c0_i32 = arith.constant 0 : i32
    %c0_i32_0 = arith.constant 0 : i32
    %c0_i32_1 = arith.constant 0 : i32
    return %arg0, %c0_i32, %c0_i32_0 : i32, i32, i32
  }
  func.func @transform_2(%arg0: i32) -> (i32, i32, i32) {
    %c0_i32 = arith.constant 0 : i32
    %c0_i32_0 = arith.constant 0 : i32
    %c0_i32_1 = arith.constant 0 : i32
    %c0_i32_2 = arith.constant 0 : i32
    return %c0_i32, %c0_i32_0, %c0_i32_1 : i32, i32, i32
  }
  func.func @transform_3(%arg0: i32) -> (i32, i32, i32) {
    %c0_i32 = arith.constant 0 : i32
    %c0_i32_0 = arith.constant 0 : i32
    %c0_i32_1 = arith.constant 0 : i32
    %c0_i32_2 = arith.constant 0 : i32
    return %c0_i32, %c0_i32_0, %c0_i32_1 : i32, i32, i32
  }
  func.func @transform_4(%arg0: i32) -> (i32, i32, i32) {
    %c0_i32 = arith.constant 0 : i32
    %c0_i32_0 = arith.constant 0 : i32
    %c0_i32_1 = arith.constant 0 : i32
    return %arg0, %c0_i32, %c0_i32_0 : i32, i32, i32
  }
}

</mosaic_0001>

<llo_original>
// kernel: tpu_custom_call.1
$region0: #{tpu_custom_call.1}
  #allocation0 [shape = 'u32[]', space=smem, size = 0x4, offset = 0x4, fixed_abs, tag = 'smem constant byte address 0x4 - core index']
  #allocation1 [shape = 'u32[144,128]{1,0:T(1,128)}', space=vmem, size = 0x12000, scoped, tag = 'internal scratch']
  %s0 = inlined_call_operand.hbm [shape: f32[16,16], index: 0, kind: input, shape index: {}]
  %s1 = inlined_call_operand.hbm [shape: f32[1,16,128], index: 1, kind: input, shape index: {}]
  %s2 = inlined_call_operand.hbm [shape: f32[5,128,128], index: 2, kind: input, shape index: {}]
  %s3 = inlined_call_operand.vmem [shape: f32[5,1,128], index: 3, kind: input, shape index: {}]
  %s4 = inlined_call_operand.hbm [shape: f32[1,16,128], index: 4, kind: output, shape index: {}]
  %s5 = sld [smem:[#allocation0]]
  $region38: #{tpu_custom_call.1} parent=0
    _
  %s7 = ssub.s32 1, %s5
  %s8 = scalar_select 0, %s7, %s5
  $region1: #{tpu_custom_call.1} parent=0
    #allocation2 [shape = 'u8[8192]{0}', space=vmem, size = 0x2000, scoped, tag = 'input window, operand 0, single buffered']
    #allocation3 [shape = 's32[1]{0}', space=sflag, size = 0x4, scoped, tag = 'scoped memory for tpu_custom_call.1']
    #allocation4 [shape = 's32[1]{0}', space=sflag, size = 0x4, scoped, tag = 'scoped memory for tpu_custom_call.1']
    #allocation5 [shape = 'u8[8192]{0}', space=vmem, size = 0x2000, scoped, tag = 'input window, operand 1, single buffered']
    #allocation6 [shape = 's32[1]{0}', space=sflag, size = 0x4, scoped, tag = 'scoped memory for tpu_custom_call.1']
    #allocation7 [shape = 'u8[327680]{0}', space=vmem, size = 0x50000, scoped, tag = 'input window, operand 2, single buffered']
    #allocation8 [shape = 'u8[8192]{0}', space=vmem, size = 0x2000, scoped, tag = 'output window, operand 0, single buffered']
    %9 = vsyncpa [#allocation3], 0
    %10 = vsyncpa [#allocation6], 0
    %11 = vsyncpa [#allocation4], 0
    // Predicated region
    $region2: #{tpu_custom_call.1} parent=1 // pred_check
      _
    $region3: #{tpu_custom_call.1} parent=1 // pred_check_branch
      %13 = sbr.rel (0) target = $region5
    $region4: #{tpu_custom_call.1} parent=1 // pred_region
      %s15 = ssub.s32 256, 256
      %16 = vsyncadd [#allocation3], %s15
      %s17 = sshll.u32 [#allocation2], 4
      %s18 = int_to_ptr.vmem [resolvable:$true] %s17
      %23 = dma.hbm_to_vmem [thread:$0]  %s0, 256, %s18, [#allocation3], 128, 128, 8
    $region5: #{tpu_custom_call.1} parent=1 // pred_fallthru
      _
    // Predicated region
    $region6: #{tpu_custom_call.1} parent=1 // pred_check
      _
    $region7: #{tpu_custom_call.1} parent=1 // pred_check_branch
      %25 = sbr.rel (0) target = $region9
    $region8: #{tpu_custom_call.1} parent=1 // pred_region
      %s27 = ssub.s32 256, 256
      %28 = vsyncadd [#allocation6], %s27
      %s29 = sshll.u32 [#allocation5], 4
      %s30 = int_to_ptr.vmem [resolvable:$true] %s29
      %35 = dma.hbm_to_vmem [thread:$0]  %s1, 256, %s30, [#allocation6], 128, 128, 8
    $region9: #{tpu_custom_call.1} parent=1 // pred_fallthru
      _
    // Predicated region
    $region10: #{tpu_custom_call.1} parent=1 // pred_check
      _
    $region11: #{tpu_custom_call.1} parent=1 // pred_check_branch
      %37 = sbr.rel (0) target = $region13
    $region12: #{tpu_custom_call.1} parent=1 // pred_region
      %s39 = ssub.s32 10240, 10240
      %40 = vsyncadd [#allocation6], %s39
      %s41 = sshll.u32 [#allocation7], 4
      %s42 = int_to_ptr.vmem [resolvable:$true] %s41
      %47 = dma.hbm_to_vmem [thread:$0]  %s2, 10240, %s42, [#allocation6], 128, 128, 8
    $region13: #{tpu_custom_call.1} parent=1 // pred_fallthru
      _
    // Predicated region
    $region14: #{tpu_custom_call.1} parent=1 // pred_check
      _
    $region15: #{tpu_custom_call.1} parent=1 // pred_check_branch
      %49 = sbr.rel (0) target = $region17
    $region16: #{tpu_custom_call.1} parent=1 // pred_region
      _
    $region17: #{tpu_custom_call.1} parent=1 // pred_fallthru
      _
    // Predicated region
    $region18: #{tpu_custom_call.1} parent=1 // pred_check
      _
    $region19: #{tpu_custom_call.1} parent=1 // pred_check_branch
      %51 = sbr.rel (0) target = $region21
    $region20: #{tpu_custom_call.1} parent=1 // pred_region
      %52 = dma.done [#allocation3], 256
    $region21: #{tpu_custom_call.1} parent=1 // pred_fallthru
      _
    // Predicated region
    $region22: #{tpu_custom_call.1} parent=1 // pred_check
      _
    $region23: #{tpu_custom_call.1} parent=1 // pred_check_branch
      %54 = sbr.rel (0) target = $region25
    $region24: #{tpu_custom_call.1} parent=1 // pred_region
      %55 = dma.done [#allocation6], 256
    $region25: #{tpu_custom_call.1} parent=1 // pred_fallthru
      _
    // Predicated region
    $region26: #{tpu_custom_call.1} parent=1 // pred_check
      _
    $region27: #{tpu_custom_call.1} parent=1 // pred_check_branch
      %57 = sbr.rel (0) target = $region29
    $region28: #{tpu_custom_call.1} parent=1 // pred_region
      %58 = dma.done [#allocation6], 10240
    $region29: #{tpu_custom_call.1} parent=1 // pred_fallthru
      _
    %v59 = vld [vmem:[#allocation2] sm:$0xff]
    %v60 = vld [vmem:[#allocation2 + $0x8] sm:$0xff]
    %v61 = vld [vmem:[#allocation5] sm:$0xff]
    %v62 = vld [vmem:[#allocation5 + $0x8] sm:$0xff]
    %v63 = vld [vmem:[#allocation7] sm:$0xff]
    %v64 = vld [vmem:[#allocation7 + $0x8] sm:$0xff]
    %v65 = vld [vmem:[#allocation7 + $0x10] sm:$0xff]
    %v66 = vld [vmem:[#allocation7 + $0x18] sm:$0xff]
    %v67 = vld [vmem:[#allocation7 + $0x20] sm:$0xff]
    %v68 = vld [vmem:[#allocation7 + $0x28] sm:$0xff]
    %v69 = vld [vmem:[#allocation7 + $0x30] sm:$0xff]
    %v70 = vld [vmem:[#allocation7 + $0x38] sm:$0xff]
    %v71 = vld [vmem:[#allocation7 + $0x40] sm:$0xff]
    %v72 = vld [vmem:[#allocation7 + $0x48] sm:$0xff]
    %v73 = vld [vmem:[#allocation7 + $0x50] sm:$0xff]
    %v74 = vld [vmem:[#allocation7 + $0x58] sm:$0xff]
    %v75 = vld [vmem:[#allocation7 + $0x60] sm:$0xff]
    %v76 = vld [vmem:[#allocation7 + $0x68] sm:$0xff]
    %v77 = vld [vmem:[#allocation7 + $0x70] sm:$0xff]
    %v78 = vld [vmem:[#allocation7 + $0x78] sm:$0xff]
    %79 = vmatprep.subr.mxu0 0.0
    %80 = vmatpush1.msra.mxu0 %v63
    %81 = vmatprep.subr.mxu0 0.0
    %82 = vmatpush1.msra.mxu0 %v64
    %83 = vmatprep.subr.mxu0 0.0
    %84 = vmatpush1.msra.mxu0 %v65
    %85 = vmatprep.subr.mxu0 0.0
    %86 = vmatpush1.msra.mxu0 %v66
    %87 = vmatprep.subr.mxu0 0.0
    %88 = vmatpush1.msra.mxu0 %v67
    %89 = vmatprep.subr.mxu0 0.0
    %90 = vmatpush1.msra.mxu0 %v68
    %91 = vmatprep.subr.mxu0 0.0
    %92 = vmatpush1.msra.mxu0 %v69
    %93 = vmatprep.subr.mxu0 0.0
    %94 = vmatpush1.msra.mxu0 %v70
    %95 = vmatprep.subr.mxu0 0.0
    %96 = vmatpush1.msra.mxu0 %v71
    %97 = vmatprep.subr.mxu0 0.0
    %98 = vmatpush1.msra.mxu0 %v72
    %99 = vmatprep.subr.mxu0 0.0
    %100 = vmatpush1.msra.mxu0 %v73
    %101 = vmatprep.subr.mxu0 0.0
    %102 = vmatpush1.msra.mxu0 %v74
    %103 = vmatprep.subr.mxu0 0.0
    %104 = vmatpush1.msra.mxu0 %v75
    %105 = vmatprep.subr.mxu0 0.0
    %106 = vmatpush1.msra.mxu0 %v76
    %107 = vmatprep.subr.mxu0 0.0
    %108 = vmatpush1.msra.mxu0 %v77
    %109 = vmatprep.subr.mxu0 0.0
    %110 = vmatpush1.msra.mxu0 %v78
    %111 = vmatprep.subr.mxu0 0.0
    %112 = vmatpush1.msra.mxu0 0.0
    %113 = vmatprep.subr.mxu0 0.0
    %114 = vmatpush1.msra.mxu0 0.0
    %115 = vmatprep.subr.mxu0 0.0
    %116 = vmatpush1.msra.mxu0 0.0
    %117 = vmatprep.subr.mxu0 0.0
    %118 = vmatpush1.msra.mxu0 0.0
    %119 = vmatprep.subr.mxu0 0.0
    %120 = vmatpush1.msra.mxu0 0.0
    %121 = vmatprep.subr.mxu0 0.0
    %122 = vmatpush1.msra.mxu0 0.0
    %123 = vmatprep.subr.mxu0 0.0
    %124 = vmatpush1.msra.mxu0 0.0
    %125 = vmatprep.subr.mxu0 0.0
    %126 = vmatpush1.msra.mxu0 0.0
    %127 = vmatprep.subr.mxu0 0.0
    %128 = vmatpush1.msra.mxu0 0.0
    %129 = vmatprep.subr.mxu0 0.0
    %130 = vmatpush1.msra.mxu0 0.0
    %131 = vmatprep.subr.mxu0 0.0
    %132 = vmatpush1.msra.mxu0 0.0
    %133 = vmatprep.subr.mxu0 0.0
    %134 = vmatpush1.msra.mxu0 0.0
    %135 = vmatprep.subr.mxu0 0.0
    %136 = vmatpush1.msra.mxu0 0.0
    %137 = vmatprep.subr.mxu0 0.0
    %138 = vmatpush1.msra.mxu0 0.0
    %139 = vmatprep.subr.mxu0 0.0
    %140 = vmatpush1.msra.mxu0 0.0
    %141 = vmatprep.subr.mxu0 0.0
    %142 = vmatpush1.msra.mxu0 0.0
    %143 = vmatprep.mubr.f32.mxu0 0.0
    %144 = vmatmul.mubr.f32.gmra.mrb[0].mxu0 %v61
    %v145 = vpop.f32.mrb[0].mxu0
    %v146 = vadd.f32 0.0, %v145
    %v147 = vpop.f32.mrb[0].mxu0
    %148 = vmatprep.mubr.f32.mxu0 0.0
    %149 = vmatmul.mubr.f32.gmra.mrb[0].mxu0 %v62
    %v150 = vpop.f32.mrb[0].mxu0
    %v151 = vadd.f32 0.0, %v150
    %v152 = vpop.f32.mrb[0].mxu0
    %153 = vdwg.mxu0
    %v154 = vld [vmem:[%s3] sm:$0x1]
    %v156 = vlaneseq
    %v157 = vshrl.u32 %v156, 7
    %v158 = vsub.s32 0, %v157
    %v159 = vrot.slane %v154, %v158
    %vm161 = vcmask 130048
    %v163 = vsel %vm161, %v59, 0
    %v166 = vsel %vm161, %v60, 0
    %168 = vmatprep.subr.mxu0 0.0
    %169 = vmatpush1.msra.mxu0 %v146
    %170 = vmatprep.subr.mxu0 0.0
    %171 = vmatpush1.msra.mxu0 %v151
    %172 = vmatprep.subr.mxu0 0.0
    %173 = vmatpush1.msra.mxu0 0.0
    %174 = vmatprep.subr.mxu0 0.0
    %175 = vmatpush1.msra.mxu0 0.0
    %176 = vmatprep.subr.mxu0 0.0
    %177 = vmatpush1.msra.mxu0 0.0
    %178 = vmatprep.subr.mxu0 0.0
    %179 = vmatpush1.msra.mxu0 0.0
    %180 = vmatprep.subr.mxu0 0.0
    %181 = vmatpush1.msra.mxu0 0.0
    %182 = vmatprep.subr.mxu0 0.0
    %183 = vmatpush1.msra.mxu0 0.0
    %184 = vmatprep.subr.mxu0 0.0
    %185 = vmatpush1.msra.mxu0 0.0
    %186 = vmatprep.subr.mxu0 0.0
    %187 = vmatpush1.msra.mxu0 0.0
    %188 = vmatprep.subr.mxu0 0.0
    %189 = vmatpush1.msra.mxu0 0.0
    %190 = vmatprep.subr.mxu0 0.0
    %191 = vmatpush1.msra.mxu0 0.0
    %192 = vmatprep.subr.mxu0 0.0
    %193 = vmatpush1.msra.mxu0 0.0
    %194 = vmatprep.subr.mxu0 0.0
    %195 = vmatpush1.msra.mxu0 0.0
    %196 = vmatprep.subr.mxu0 0.0
    %197 = vmatpush1.msra.mxu0 0.0
    %198 = vmatprep.subr.mxu0 0.0
    %199 = vmatpush1.msra.mxu0 0.0
    %200 = vmatprep.subr.mxu0 0.0
    %201 = vmatpush1.msra.mxu0 0.0
    %202 = vmatprep.subr.mxu0 0.0
    %203 = vmatpush1.msra.mxu0 0.0
    %204 = vmatprep.subr.mxu0 0.0
    %205 = vmatpush1.msra.mxu0 0.0
    %206 = vmatprep.subr.mxu0 0.0
    %207 = vmatpush1.msra.mxu0 0.0
    %208 = vmatprep.subr.mxu0 0.0
    %209 = vmatpush1.msra.mxu0 0.0
    %210 = vmatprep.subr.mxu0 0.0
    %211 = vmatpush1.msra.mxu0 0.0
    %212 = vmatprep.subr.mxu0 0.0
    %213 = vmatpush1.msra.mxu0 0.0
    %214 = vmatprep.subr.mxu0 0.0
    %215 = vmatpush1.msra.mxu0 0.0
    %216 = vmatprep.subr.mxu0 0.0
    %217 = vmatpush1.msra.mxu0 0.0
    %218 = vmatprep.subr.mxu0 0.0
    %219 = vmatpush1.msra.mxu0 0.0
    %220 = vmatprep.subr.mxu0 0.0
    %221 = vmatpush1.msra.mxu0 0.0
    %222 = vmatprep.subr.mxu0 0.0
    %223 = vmatpush1.msra.mxu0 0.0
    %224 = vmatprep.subr.mxu0 0.0
    %225 = vmatpush1.msra.mxu0 0.0
    %226 = vmatprep.subr.mxu0 0.0
    %227 = vmatpush1.msra.mxu0 0.0
    %228 = vmatprep.subr.mxu0 0.0
    %229 = vmatpush1.msra.mxu0 0.0
    %230 = vmatprep.subr.mxu0 0.0
    %231 = vmatpush1.msra.mxu0 0.0
    %232 = vmatprep.mubr.f32.mxu0 0.0
    %233 = vmatmul.mubr.f32.gmra.mrb[0].mxu0 %v163
    %v234 = vpop.f32.mrb[0].mxu0
    %v235 = vadd.f32 %v159, %v234
    %v236 = vpop.f32.mrb[0].mxu0
    %237 = vmatprep.mubr.f32.mxu0 0.0
    %238 = vmatmul.mubr.f32.gmra.mrb[0].mxu0 %v166
    %v239 = vpop.f32.mrb[0].mxu0
    %v240 = vadd.f32 %v159, %v239
    %v241 = vpop.f32.mrb[0].mxu0
    %242 = vdwg.mxu0
    %v243 = vmax.f32 %v235, 0.0
    %v244 = vmax.f32 %v240, 0.0
    %s245 = scalar_lea.vmem [#allocation7], 128
    %v246 = vld [vmem:[%s245] sm:$0xff]
    %v247 = vld [vmem:[%s245 + $0x8] sm:$0xff]
    %v248 = vld [vmem:[%s245 + $0x10] sm:$0xff]
    %v249 = vld [vmem:[%s245 + $0x18] sm:$0xff]
    %v250 = vld [vmem:[%s245 + $0x20] sm:$0xff]
    %v251 = vld [vmem:[%s245 + $0x28] sm:$0xff]
    %v252 = vld [vmem:[%s245 + $0x30] sm:$0xff]
    %v253 = vld [vmem:[%s245 + $0x38] sm:$0xff]
    %v254 = vld [vmem:[%s245 + $0x40] sm:$0xff]
    %v255 = vld [vmem:[%s245 + $0x48] sm:$0xff]
    %v256 = vld [vmem:[%s245 + $0x50] sm:$0xff]
    %v257 = vld [vmem:[%s245 + $0x58] sm:$0xff]
    %v258 = vld [vmem:[%s245 + $0x60] sm:$0xff]
    %v259 = vld [vmem:[%s245 + $0x68] sm:$0xff]
    %v260 = vld [vmem:[%s245 + $0x70] sm:$0xff]
    %v261 = vld [vmem:[%s245 + $0x78] sm:$0xff]
    %262 = vmatprep.subr.mxu0 0.0
    %263 = vmatpush1.msra.mxu0 %v246
    %264 = vmatprep.subr.mxu0 0.0
    %265 = vmatpush1.msra.mxu0 %v247
    %266 = vmatprep.subr.mxu0 0.0
    %267 = vmatpush1.msra.mxu0 %v248
    %268 = vmatprep.subr.mxu0 0.0
    %269 = vmatpush1.msra.mxu0 %v249
    %270 = vmatprep.subr.mxu0 0.0
    %271 = vmatpush1.msra.mxu0 %v250
    %272 = vmatprep.subr.mxu0 0.0
    %273 = vmatpush1.msra.mxu0 %v251
    %274 = vmatprep.subr.mxu0 0.0
    %275 = vmatpush1.msra.mxu0 %v252
    %276 = vmatprep.subr.mxu0 0.0
    %277 = vmatpush1.msra.mxu0 %v253
    %278 = vmatprep.subr.mxu0 0.0
    %279 = vmatpush1.msra.mxu0 %v254
    %280 = vmatprep.subr.mxu0 0.0
    %281 = vmatpush1.msra.mxu0 %v255
    %282 = vmatprep.subr.mxu0 0.0
    %283 = vmatpush1.msra.mxu0 %v256
    %284 = vmatprep.subr.mxu0 0.0
    %285 = vmatpush1.msra.mxu0 %v257
    %286 = vmatprep.subr.mxu0 0.0
    %287 = vmatpush1.msra.mxu0 %v258
    %288 = vmatprep.subr.mxu0 0.0
    %289 = vmatpush1.msra.mxu0 %v259
    %290 = vmatprep.subr.mxu0 0.0
    %291 = vmatpush1.msra.mxu0 %v260
    %292 = vmatprep.subr.mxu0 0.0
    %293 = vmatpush1.msra.mxu0 %v261
    %294 = vmatprep.subr.mxu0 0.0
    %295 = vmatpush1.msra.mxu0 0.0
    %296 = vmatprep.subr.mxu0 0.0
    %297 = vmatpush1.msra.mxu0 0.0
    %298 = vmatprep.subr.mxu0 0.0
    %299 = vmatpush1.msra.mxu0 0.0
    %300 = vmatprep.subr.mxu0 0.0
    %301 = vmatpush1.msra.mxu0 0.0
    %302 = vmatprep.subr.mxu0 0.0
    %303 = vmatpush1.msra.mxu0 0.0
    %304 = vmatprep.subr.mxu0 0.0
    %305 = vmatpush1.msra.mxu0 0.0
    %306 = vmatprep.subr.mxu0 0.0
    %307 = vmatpush1.msra.mxu0 0.0
    %308 = vmatprep.subr.mxu0 0.0
    %309 = vmatpush1.msra.mxu0 0.0
    %310 = vmatprep.subr.mxu0 0.0
    %311 = vmatpush1.msra.mxu0 0.0
    %312 = vmatprep.subr.mxu0 0.0
    %313 = vmatpush1.msra.mxu0 0.0
    %314 = vmatprep.subr.mxu0 0.0
    %315 = vmatpush1.msra.mxu0 0.0
    %316 = vmatprep.subr.mxu0 0.0
    %317 = vmatpush1.msra.mxu0 0.0
    %318 = vmatprep.subr.mxu0 0.0
    %319 = vmatpush1.msra.mxu0 0.0
    %320 = vmatprep.subr.mxu0 0.0
    %321 = vmatpush1.msra.mxu0 0.0
    %322 = vmatprep.subr.mxu0 0.0
    %323 = vmatpush1.msra.mxu0 0.0
    %324 = vmatprep.subr.mxu0 0.0
    %325 = vmatpush1.msra.mxu0 0.0
    %326 = vmatprep.mubr.f32.mxu0 0.0
    %327 = vmatmul.mubr.f32.gmra.mrb[0].mxu0 %v243
    %v328 = vpop.f32.mrb[0].mxu0
    %v329 = vadd.f32 0.0, %v328
    %v330 = vpop.f32.mrb[0].mxu0
    %331 = vmatprep.mubr.f32.mxu0 0.0
    %332 = vmatmul.mubr.f32.gmra.mrb[0].mxu0 %v244
    %v333 = vpop.f32.mrb[0].mxu0
    %v334 = vadd.f32 0.0, %v333
    %v335 = vpop.f32.mrb[0].mxu0
    %336 = vdwg.mxu0
    %s337 = scalar_lea.vmem %s3, 1
    %v338 = vld [vmem:[%s337] sm:$0x1]
    %v340 = vlaneseq
    %v341 = vshrl.u32 %v340, 7
    %v342 = vsub.s32 0, %v341
    %v343 = vrot.slane %v338, %v342
    %345 = vmatprep.subr.mxu0 0.0
    %346 = vmatpush1.msra.mxu0 %v329
    %347 = vmatprep.subr.mxu0 0.0
    %348 = vmatpush1.msra.mxu0 %v334
    %349 = vmatprep.subr.mxu0 0.0
    %350 = vmatpush1.msra.mxu0 0.0
    %351 = vmatprep.subr.mxu0 0.0
    %352 = vmatpush1.msra.mxu0 0.0
    %353 = vmatprep.subr.mxu0 0.0
    %354 = vmatpush1.msra.mxu0 0.0
    %355 = vmatprep.subr.mxu0 0.0
    %356 = vmatpush1.msra.mxu0 0.0
    %357 = vmatprep.subr.mxu0 0.0
    %358 = vmatpush1.msra.mxu0 0.0
    %359 = vmatprep.subr.mxu0 0.0
    %360 = vmatpush1.msra.mxu0 0.0
    %361 = vmatprep.subr.mxu0 0.0
    %362 = vmatpush1.msra.mxu0 0.0
    %363 = vmatprep.subr.mxu0 0.0
    %364 = vmatpush1.msra.mxu0 0.0
    %365 = vmatprep.subr.mxu0 0.0
    %366 = vmatpush1.msra.mxu0 0.0
    %367 = vmatprep.subr.mxu0 0.0
    %368 = vmatpush1.msra.mxu0 0.0
    %369 = vmatprep.subr.mxu0 0.0
    %370 = vmatpush1.msra.mxu0 0.0
    %371 = vmatprep.subr.mxu0 0.0
    %372 = vmatpush1.msra.mxu0 0.0
    %373 = vmatprep.subr.mxu0 0.0
    %374 = vmatpush1.msra.mxu0 0.0
    %375 = vmatprep.subr.mxu0 0.0
    %376 = vmatpush1.msra.mxu0 0.0
    %377 = vmatprep.subr.mxu0 0.0
    %378 = vmatpush1.msra.mxu0 0.0
    %379 = vmatprep.subr.mxu0 0.0
    %380 = vmatpush1.msra.mxu0 0.0
    %381 = vmatprep.subr.mxu0 0.0
    %382 = vmatpush1.msra.mxu0 0.0
    %383 = vmatprep.subr.mxu0 0.0
    %384 = vmatpush1.msra.mxu0 0.0
    %385 = vmatprep.subr.mxu0 0.0
    %386 = vmatpush1.msra.mxu0 0.0
    %387 = vmatprep.subr.mxu0 0.0
    %388 = vmatpush1.msra.mxu0 0.0
    %389 = vmatprep.subr.mxu0 0.0
    %390 = vmatpush1.msra.mxu0 0.0
    %391 = vmatprep.subr.mxu0 0.0
    %392 = vmatpush1.msra.mxu0 0.0
    %393 = vmatprep.subr.mxu0 0.0
    %394 = vmatpush1.msra.mxu0 0.0
    %395 = vmatprep.subr.mxu0 0.0
    %396 = vmatpush1.msra.mxu0 0.0
    %397 = vmatprep.subr.mxu0 0.0
    %398 = vmatpush1.msra.mxu0 0.0
    %399 = vmatprep.subr.mxu0 0.0
    %400 = vmatpush1.msra.mxu0 0.0
    %401 = vmatprep.subr.mxu0 0.0
    %402 = vmatpush1.msra.mxu0 0.0
    %403 = vmatprep.subr.mxu0 0.0
    %404 = vmatpush1.msra.mxu0 0.0
    %405 = vmatprep.subr.mxu0 0.0
    %406 = vmatpush1.msra.mxu0 0.0
    %407 = vmatprep.subr.mxu0 0.0
    %408 = vmatpush1.msra.mxu0 0.0
    %409 = vmatprep.mubr.f32.mxu0 0.0
    %410 = vmatmul.mubr.f32.gmra.mrb[0].mxu0 %v163
    %v411 = vpop.f32.mrb[0].mxu0
    %v412 = vadd.f32 %v343, %v411
    %v413 = vpop.f32.mrb[0].mxu0
    %414 = vmatprep.mubr.f32.mxu0 0.0
    %415 = vmatmul.mubr.f32.gmra.mrb[0].mxu0 %v166
    %v416 = vpop.f32.mrb[0].mxu0
    %v417 = vadd.f32 %v343, %v416
    %v418 = vpop.f32.mrb[0].mxu0
    %419 = vdwg.mxu0
    %v420 = vmax.f32 %v412, 0.0
    %v421 = vmax.f32 %v417, 0.0
    %s422 = scalar_lea.vmem [#allocation7], 256
    %v423 = vld [vmem:[%s422] sm:$0xff]
    %v424 = vld [vmem:[%s422 + $0x8] sm:$0xff]
    %v425 = vld [vmem:[%s422 + $0x10] sm:$0xff]
    %v426 = vld [vmem:[%s422 + $0x18] sm:$0xff]
    %v427 = vld [vmem:[%s422 + $0x20] sm:$0xff]
    %v428 = vld [vmem:[%s422 + $0x28] sm:$0xff]
    %v429 = vld [vmem:[%s422 + $0x30] sm:$0xff]
    %v430 = vld [vmem:[%s422 + $0x38] sm:$0xff]
    %v431 = vld [vmem:[%s422 + $0x40] sm:$0xff]
    %v432 = vld [vmem:[%s422 + $0x48] sm:$0xff]
    %v433 = vld [vmem:[%s422 + $0x50] sm:$0xff]
    %v434 = vld [vmem:[%s422 + $0x58] sm:$0xff]
    %v435 = vld [vmem:[%s422 + $0x60] sm:$0xff]
    %v436 = vld [vmem:[%s422 + $0x68] sm:$0xff]
    %v437 = vld [vmem:[%s422 + $0x70] sm:$0xff]
    %v438 = vld [vmem:[%s422 + $0x78] sm:$0xff]
    %439 = vmatprep.subr.mxu0 0.0
    %440 = vmatpush1.msra.mxu0 %v423
    %441 = vmatprep.subr.mxu0 0.0
    %442 = vmatpush1.msra.mxu0 %v424
    %443 = vmatprep.subr.mxu0 0.0
    %444 = vmatpush1.msra.mxu0 %v425
    %445 = vmatprep.subr.mxu0 0.0
    %446 = vmatpush1.msra.mxu0 %v426
    %447 = vmatprep.subr.mxu0 0.0
    %448 = vmatpush1.msra.mxu0 %v427
    %449 = vmatprep.subr.mxu0 0.0
    %450 = vmatpush1.msra.mxu0 %v428
    %451 = vmatprep.subr.mxu0 0.0
    %452 = vmatpush1.msra.mxu0 %v429
    %453 = vmatprep.subr.mxu0 0.0
    %454 = vmatpush1.msra.mxu0 %v430
    %455 = vmatprep.subr.mxu0 0.0
    %456 = vmatpush1.msra.mxu0 %v431
    %457 = vmatprep.subr.mxu0 0.0
    %458 = vmatpush1.msra.mxu0 %v432
    %459 = vmatprep.subr.mxu0 0.0
    %460 = vmatpush1.msra.mxu0 %v433
    %461 = vmatprep.subr.mxu0 0.0
    %462 = vmatpush1.msra.mxu0 %v434
    %463 = vmatprep.subr.mxu0 0.0
    %464 = vmatpush1.msra.mxu0 %v435
    %465 = vmatprep.subr.mxu0 0.0
    %466 = vmatpush1.msra.mxu0 %v436
    %467 = vmatprep.subr.mxu0 0.0
    %468 = vmatpush1.msra.mxu0 %v437
    %469 = vmatprep.subr.mxu0 0.0
    %470 = vmatpush1.msra.mxu0 %v438
    %471 = vmatprep.subr.mxu0 0.0
    %472 = vmatpush1.msra.mxu0 0.0
    %473 = vmatprep.subr.mxu0 0.0
    %474 = vmatpush1.msra.mxu0 0.0
    %475 = vmatprep.subr.mxu0 0.0
    %476 = vmatpush1.msra.mxu0 0.0
    %477 = vmatprep.subr.mxu0 0.0
    %478 = vmatpush1.msra.mxu0 0.0
    %479 = vmatprep.subr.mxu0 0.0
    %480 = vmatpush1.msra.mxu0 0.0
    %481 = vmatprep.subr.mxu0 0.0
    %482 = vmatpush1.msra.mxu0 0.0
    %483 = vmatprep.subr.mxu0 0.0
    %484 = vmatpush1.msra.mxu0 0.0
    %485 = vmatprep.subr.mxu0 0.0
    %486 = vmatpush1.msra.mxu0 0.0
    %487 = vmatprep.subr.mxu0 0.0
    %488 = vmatpush1.msra.mxu0 0.0
    %489 = vmatprep.subr.mxu0 0.0
    %490 = vmatpush1.msra.mxu0 0.0
    %491 = vmatprep.subr.mxu0 0.0
    %492 = vmatpush1.msra.mxu0 0.0
    %493 = vmatprep.subr.mxu0 0.0
    %494 = vmatpush1.msra.mxu0 0.0
    %495 = vmatprep.subr.mxu0 0.0
    %496 = vmatpush1.msra.mxu0 0.0
    %497 = vmatprep.subr.mxu0 0.0
    %498 = vmatpush1.msra.mxu0 0.0
    %499 = vmatprep.subr.mxu0 0.0
    %500 = vmatpush1.msra.mxu0 0.0
    %501 = vmatprep.subr.mxu0 0.0
    %502 = vmatpush1.msra.mxu0 0.0
    %503 = vmatprep.mubr.f32.mxu0 0.0
    %504 = vmatmul.mubr.f32.gmra.mrb[0].mxu0 %v420
    %v505 = vpop.f32.mrb[0].mxu0
    %v506 = vadd.f32 0.0, %v505
    %v507 = vpop.f32.mrb[0].mxu0
    %508 = vmatprep.mubr.f32.mxu0 0.0
    %509 = vmatmul.mubr.f32.gmra.mrb[0].mxu0 %v421
    %v510 = vpop.f32.mrb[0].mxu0
    %v511 = vadd.f32 0.0, %v510
    %v512 = vpop.f32.mrb[0].mxu0
    %513 = vdwg.mxu0
    %s514 = scalar_lea.vmem %s3, 2
    %v515 = vld [vmem:[%s514] sm:$0x1]
    %v517 = vlaneseq
    %v518 = vshrl.u32 %v517, 7
    %v519 = vsub.s32 0, %v518
    %v520 = vrot.slane %v515, %v519
    %522 = vmatprep.subr.mxu0 0.0
    %523 = vmatpush1.msra.mxu0 %v506
    %524 = vmatprep.subr.mxu0 0.0
    %525 = vmatpush1.msra.mxu0 %v511
    %526 = vmatprep.subr.mxu0 0.0
    %527 = vmatpush1.msra.mxu0 0.0
    %528 = vmatprep.subr.mxu0 0.0
    %529 = vmatpush1.msra.mxu0 0.0
    %530 = vmatprep.subr.mxu0 0.0
    %531 = vmatpush1.msra.mxu0 0.0
    %532 = vmatprep.subr.mxu0 0.0
    %533 = vmatpush1.msra.mxu0 0.0
    %534 = vmatprep.subr.mxu0 0.0
    %535 = vmatpush1.msra.mxu0 0.0
    %536 = vmatprep.subr.mxu0 0.0
    %537 = vmatpush1.msra.mxu0 0.0
    %538 = vmatprep.subr.mxu0 0.0
    %539 = vmatpush1.msra.mxu0 0.0
    %540 = vmatprep.subr.mxu0 0.0
    %541 = vmatpush1.msra.mxu0 0.0
    %542 = vmatprep.subr.mxu0 0.0
    %543 = vmatpush1.msra.mxu0 0.0
    %544 = vmatprep.subr.mxu0 0.0
    %545 = vmatpush1.msra.mxu0 0.0
    %546 = vmatprep.subr.mxu0 0.0
    %547 = vmatpush1.msra.mxu0 0.0
    %548 = vmatprep.subr.mxu0 0.0
    %549 = vmatpush1.msra.mxu0 0.0
    %550 = vmatprep.subr.mxu0 0.0
    %551 = vmatpush1.msra.mxu0 0.0
    %552 = vmatprep.subr.mxu0 0.0
    %553 = vmatpush1.msra.mxu0 0.0
    %554 = vmatprep.subr.mxu0 0.0
    %555 = vmatpush1.msra.mxu0 0.0
    %556 = vmatprep.subr.mxu0 0.0
    %557 = vmatpush1.msra.mxu0 0.0
    %558 = vmatprep.subr.mxu0 0.0
    %559 = vmatpush1.msra.mxu0 0.0
    %560 = vmatprep.subr.mxu0 0.0
    %561 = vmatpush1.msra.mxu0 0.0
    %562 = vmatprep.subr.mxu0 0.0
    %563 = vmatpush1.msra.mxu0 0.0
    %564 = vmatprep.subr.mxu0 0.0
    %565 = vmatpush1.msra.mxu0 0.0
    %566 = vmatprep.subr.mxu0 0.0
    %567 = vmatpush1.msra.mxu0 0.0
    %568 = vmatprep.subr.mxu0 0.0
    %569 = vmatpush1.msra.mxu0 0.0
    %570 = vmatprep.subr.mxu0 0.0
    %571 = vmatpush1.msra.mxu0 0.0
    %572 = vmatprep.subr.mxu0 0.0
    %573 = vmatpush1.msra.mxu0 0.0
    %574 = vmatprep.subr.mxu0 0.0
    %575 = vmatpush1.msra.mxu0 0.0
    %576 = vmatprep.subr.mxu0 0.0
    %577 = vmatpush1.msra.mxu0 0.0
    %578 = vmatprep.subr.mxu0 0.0
    %579 = vmatpush1.msra.mxu0 0.0
    %580 = vmatprep.subr.mxu0 0.0
    %581 = vmatpush1.msra.mxu0 0.0
    %582 = vmatprep.subr.mxu0 0.0
    %583 = vmatpush1.msra.mxu0 0.0
    %584 = vmatprep.subr.mxu0 0.0
    %585 = vmatpush1.msra.mxu0 0.0
    %586 = vmatprep.mubr.f32.mxu0 0.0
    %587 = vmatmul.mubr.f32.gmra.mrb[0].mxu0 %v163
    %v588 = vpop.f32.mrb[0].mxu0
    %v589 = vadd.f32 %v520, %v588
    %v590 = vpop.f32.mrb[0].mxu0
    %591 = vmatprep.mubr.f32.mxu0 0.0
    %592 = vmatmul.mubr.f32.gmra.mrb[0].mxu0 %v166
    %v593 = vpop.f32.mrb[0].mxu0
    %v594 = vadd.f32 %v520, %v593
    %v595 = vpop.f32.mrb[0].mxu0
    %596 = vdwg.mxu0
    %v597 = vmax.f32 %v589, 0.0
    %v598 = vmax.f32 %v594, 0.0
    %s599 = scalar_lea.vmem [#allocation7], 384
    %v600 = vld [vmem:[%s599] sm:$0xff]
    %v601 = vld [vmem:[%s599 + $0x8] sm:$0xff]
    %v602 = vld [vmem:[%s599 + $0x10] sm:$0xff]
    %v603 = vld [vmem:[%s599 + $0x18] sm:$0xff]
    %v604 = vld [vmem:[%s599 + $0x20] sm:$0xff]
    %v605 = vld [vmem:[%s599 + $0x28] sm:$0xff]
    %v606 = vld [vmem:[%s599 + $0x30] sm:$0xff]
    %v607 = vld [vmem:[%s599 + $0x38] sm:$0xff]
    %v608 = vld [vmem:[%s599 + $0x40] sm:$0xff]
    %v609 = vld [vmem:[%s599 + $0x48] sm:$0xff]
    %v610 = vld [vmem:[%s599 + $0x50] sm:$0xff]
    %v611 = vld [vmem:[%s599 + $0x58] sm:$0xff]
    %v612 = vld [vmem:[%s599 + $0x60] sm:$0xff]
    %v613 = vld [vmem:[%s599 + $0x68] sm:$0xff]
    %v614 = vld [vmem:[%s599 + $0x70] sm:$0xff]
    %v615 = vld [vmem:[%s599 + $0x78] sm:$0xff]
    %616 = vmatprep.subr.mxu0 0.0
    %617 = vmatpush1.msra.mxu0 %v600
    %618 = vmatprep.subr.mxu0 0.0
    %619 = vmatpush1.msra.mxu0 %v601
    %620 = vmatprep.subr.mxu0 0.0
    %621 = vmatpush1.msra.mxu0 %v602
    %622 = vmatprep.subr.mxu0 0.0
    %623 = vmatpush1.msra.mxu0 %v603
    %624 = vmatprep.subr.mxu0 0.0
    %625 = vmatpush1.msra.mxu0 %v604
    %626 = vmatprep.subr.mxu0 0.0
    %627 = vmatpush1.msra.mxu0 %v605
    %628 = vmatprep.subr.mxu0 0.0
    %629 = vmatpush1.msra.mxu0 %v606
    %630 = vmatprep.subr.mxu0 0.0
    %631 = vmatpush1.msra.mxu0 %v607
    %632 = vmatprep.subr.mxu0 0.0
    %633 = vmatpush1.msra.mxu0 %v608
    %634 = vmatprep.subr.mxu0 0.0
    %635 = vmatpush1.msra.mxu0 %v609
    %636 = vmatprep.subr.mxu0 0.0
    %637 = vmatpush1.msra.mxu0 %v610
    %638 = vmatprep.subr.mxu0 0.0
    %639 = vmatpush1.msra.mxu0 %v611
    %640 = vmatprep.subr.mxu0 0.0
    %641 = vmatpush1.msra.mxu0 %v612
    %642 = vmatprep.subr.mxu0 0.0
    %643 = vmatpush1.msra.mxu0 %v613
    %644 = vmatprep.subr.mxu0 0.0
    %645 = vmatpush1.msra.mxu0 %v614
    %646 = vmatprep.subr.mxu0 0.0
    %647 = vmatpush1.msra.mxu0 %v615
    %648 = vmatprep.subr.mxu0 0.0
    %649 = vmatpush1.msra.mxu0 0.0
    %650 = vmatprep.subr.mxu0 0.0
    %651 = vmatpush1.msra.mxu0 0.0
    %652 = vmatprep.subr.mxu0 0.0
    %653 = vmatpush1.msra.mxu0 0.0
    %654 = vmatprep.subr.mxu0 0.0
    %655 = vmatpush1.msra.mxu0 0.0
    %656 = vmatprep.subr.mxu0 0.0
    %657 = vmatpush1.msra.mxu0 0.0
    %658 = vmatprep.subr.mxu0 0.0
    %659 = vmatpush1.msra.mxu0 0.0
    %660 = vmatprep.subr.mxu0 0.0
    %661 = vmatpush1.msra.mxu0 0.0
    %662 = vmatprep.subr.mxu0 0.0
    %663 = vmatpush1.msra.mxu0 0.0
    %664 = vmatprep.subr.mxu0 0.0
    %665 = vmatpush1.msra.mxu0 0.0
    %666 = vmatprep.subr.mxu0 0.0
    %667 = vmatpush1.msra.mxu0 0.0
    %668 = vmatprep.subr.mxu0 0.0
    %669 = vmatpush1.msra.mxu0 0.0
    %670 = vmatprep.subr.mxu0 0.0
    %671 = vmatpush1.msra.mxu0 0.0
    %672 = vmatprep.subr.mxu0 0.0
    %673 = vmatpush1.msra.mxu0 0.0
    %674 = vmatprep.subr.mxu0 0.0
    %675 = vmatpush1.msra.mxu0 0.0
    %676 = vmatprep.subr.mxu0 0.0
    %677 = vmatpush1.msra.mxu0 0.0
    %678 = vmatprep.subr.mxu0 0.0
    %679 = vmatpush1.msra.mxu0 0.0
    %680 = vmatprep.mubr.f32.mxu0 0.0
    %681 = vmatmul.mubr.f32.gmra.mrb[0].mxu0 %v597
    %v682 = vpop.f32.mrb[0].mxu0
    %v683 = vadd.f32 0.0, %v682
    %v684 = vpop.f32.mrb[0].mxu0
    %685 = vmatprep.mubr.f32.mxu0 0.0
    %686 = vmatmul.mubr.f32.gmra.mrb[0].mxu0 %v598
    %v687 = vpop.f32.mrb[0].mxu0
    %v688 = vadd.f32 0.0, %v687
    %v689 = vpop.f32.mrb[0].mxu0
    %690 = vdwg.mxu0
    %s691 = scalar_lea.vmem %s3, 3
    %v692 = vld [vmem:[%s691] sm:$0x1]
    %v694 = vlaneseq
    %v695 = vshrl.u32 %v694, 7
    %v696 = vsub.s32 0, %v695
    %v697 = vrot.slane %v692, %v696
    %699 = vmatprep.subr.mxu0 0.0
    %700 = vmatpush1.msra.mxu0 %v683
    %701 = vmatprep.subr.mxu0 0.0
    %702 = vmatpush1.msra.mxu0 %v688
    %703 = vmatprep.subr.mxu0 0.0
    %704 = vmatpush1.msra.mxu0 0.0
    %705 = vmatprep.subr.mxu0 0.0
    %706 = vmatpush1.msra.mxu0 0.0
    %707 = vmatprep.subr.mxu0 0.0
    %708 = vmatpush1.msra.mxu0 0.0
    %709 = vmatprep.subr.mxu0 0.0
    %710 = vmatpush1.msra.mxu0 0.0
    %711 = vmatprep.subr.mxu0 0.0
    %712 = vmatpush1.msra.mxu0 0.0
    %713 = vmatprep.subr.mxu0 0.0
    %714 = vmatpush1.msra.mxu0 0.0
    %715 = vmatprep.subr.mxu0 0.0
    %716 = vmatpush1.msra.mxu0 0.0
    %717 = vmatprep.subr.mxu0 0.0
    %718 = vmatpush1.msra.mxu0 0.0
    %719 = vmatprep.subr.mxu0 0.0
    %720 = vmatpush1.msra.mxu0 0.0
    %721 = vmatprep.subr.mxu0 0.0
    %722 = vmatpush1.msra.mxu0 0.0
    %723 = vmatprep.subr.mxu0 0.0
    %724 = vmatpush1.msra.mxu0 0.0
    %725 = vmatprep.subr.mxu0 0.0
    %726 = vmatpush1.msra.mxu0 0.0
    %727 = vmatprep.subr.mxu0 0.0
    %728 = vmatpush1.msra.mxu0 0.0
    %729 = vmatprep.subr.mxu0 0.0
    %730 = vmatpush1.msra.mxu0 0.0
    %731 = vmatprep.subr.mxu0 0.0
    %732 = vmatpush1.msra.mxu0 0.0
    %733 = vmatprep.subr.mxu0 0.0
    %734 = vmatpush1.msra.mxu0 0.0
    %735 = vmatprep.subr.mxu0 0.0
    %736 = vmatpush1.msra.mxu0 0.0
    %737 = vmatprep.subr.mxu0 0.0
    %738 = vmatpush1.msra.mxu0 0.0
    %739 = vmatprep.subr.mxu0 0.0
    %740 = vmatpush1.msra.mxu0 0.0
    %741 = vmatprep.subr.mxu0 0.0
    %742 = vmatpush1.msra.mxu0 0.0
    %743 = vmatprep.subr.mxu0 0.0
    %744 = vmatpush1.msra.mxu0 0.0
    %745 = vmatprep.subr.mxu0 0.0
    %746 = vmatpush1.msra.mxu0 0.0
    %747 = vmatprep.subr.mxu0 0.0
    %748 = vmatpush1.msra.mxu0 0.0
    %749 = vmatprep.subr.mxu0 0.0
    %750 = vmatpush1.msra.mxu0 0.0
    %751 = vmatprep.subr.mxu0 0.0
    %752 = vmatpush1.msra.mxu0 0.0
    %753 = vmatprep.subr.mxu0 0.0
    %754 = vmatpush1.msra.mxu0 0.0
    %755 = vmatprep.subr.mxu0 0.0
    %756 = vmatpush1.msra.mxu0 0.0
    %757 = vmatprep.subr.mxu0 0.0
    %758 = vmatpush1.msra.mxu0 0.0
    %759 = vmatprep.subr.mxu0 0.0
    %760 = vmatpush1.msra.mxu0 0.0
    %761 = vmatprep.subr.mxu0 0.0
    %762 = vmatpush1.msra.mxu0 0.0
    %763 = vmatprep.mubr.f32.mxu0 0.0
    %764 = vmatmul.mubr.f32.gmra.mrb[0].mxu0 %v163
    %v765 = vpop.f32.mrb[0].mxu0
    %v766 = vadd.f32 %v697, %v765
    %v767 = vpop.f32.mrb[0].mxu0
    %768 = vmatprep.mubr.f32.mxu0 0.0
    %769 = vmatmul.mubr.f32.gmra.mrb[0].mxu0 %v166
    %v770 = vpop.f32.mrb[0].mxu0
    %v771 = vadd.f32 %v697, %v770
    %v772 = vpop.f32.mrb[0].mxu0
    %773 = vdwg.mxu0
    %v774 = vmax.f32 %v766, 0.0
    %v775 = vmax.f32 %v771, 0.0
    %s776 = scalar_lea.vmem [#allocation7], 512
    %v777 = vld [vmem:[%s776] sm:$0xff]
    %v778 = vld [vmem:[%s776 + $0x8] sm:$0xff]
    %v779 = vld [vmem:[%s776 + $0x10] sm:$0xff]
    %v780 = vld [vmem:[%s776 + $0x18] sm:$0xff]
    %v781 = vld [vmem:[%s776 + $0x20] sm:$0xff]
    %v782 = vld [vmem:[%s776 + $0x28] sm:$0xff]
    %v783 = vld [vmem:[%s776 + $0x30] sm:$0xff]
    %v784 = vld [vmem:[%s776 + $0x38] sm:$0xff]
    %v785 = vld [vmem:[%s776 + $0x40] sm:$0xff]
    %v786 = vld [vmem:[%s776 + $0x48] sm:$0xff]
    %v787 = vld [vmem:[%s776 + $0x50] sm:$0xff]
    %v788 = vld [vmem:[%s776 + $0x58] sm:$0xff]
    %v789 = vld [vmem:[%s776 + $0x60] sm:$0xff]
    %v790 = vld [vmem:[%s776 + $0x68] sm:$0xff]
    %v791 = vld [vmem:[%s776 + $0x70] sm:$0xff]
    %v792 = vld [vmem:[%s776 + $0x78] sm:$0xff]
    %793 = vmatprep.subr.mxu0 0.0
    %794 = vmatpush1.msra.mxu0 %v777
    %795 = vmatprep.subr.mxu0 0.0
    %796 = vmatpush1.msra.mxu0 %v778
    %797 = vmatprep.subr.mxu0 0.0
    %798 = vmatpush1.msra.mxu0 %v779
    %799 = vmatprep.subr.mxu0 0.0
    %800 = vmatpush1.msra.mxu0 %v780
    %801 = vmatprep.subr.mxu0 0.0
    %802 = vmatpush1.msra.mxu0 %v781
    %803 = vmatprep.subr.mxu0 0.0
    %804 = vmatpush1.msra.mxu0 %v782
    %805 = vmatprep.subr.mxu0 0.0
    %806 = vmatpush1.msra.mxu0 %v783
    %807 = vmatprep.subr.mxu0 0.0
    %808 = vmatpush1.msra.mxu0 %v784
    %809 = vmatprep.subr.mxu0 0.0
    %810 = vmatpush1.msra.mxu0 %v785
    %811 = vmatprep.subr.mxu0 0.0
    %812 = vmatpush1.msra.mxu0 %v786
    %813 = vmatprep.subr.mxu0 0.0
    %814 = vmatpush1.msra.mxu0 %v787
    %815 = vmatprep.subr.mxu0 0.0
    %816 = vmatpush1.msra.mxu0 %v788
    %817 = vmatprep.subr.mxu0 0.0
    %818 = vmatpush1.msra.mxu0 %v789
    %819 = vmatprep.subr.mxu0 0.0
    %820 = vmatpush1.msra.mxu0 %v790
    %821 = vmatprep.subr.mxu0 0.0
    %822 = vmatpush1.msra.mxu0 %v791
    %823 = vmatprep.subr.mxu0 0.0
    %824 = vmatpush1.msra.mxu0 %v792
    %825 = vmatprep.subr.mxu0 0.0
    %826 = vmatpush1.msra.mxu0 0.0
    %827 = vmatprep.subr.mxu0 0.0
    %828 = vmatpush1.msra.mxu0 0.0
    %829 = vmatprep.subr.mxu0 0.0
    %830 = vmatpush1.msra.mxu0 0.0
    %831 = vmatprep.subr.mxu0 0.0
    %832 = vmatpush1.msra.mxu0 0.0
    %833 = vmatprep.subr.mxu0 0.0
    %834 = vmatpush1.msra.mxu0 0.0
    %835 = vmatprep.subr.mxu0 0.0
    %836 = vmatpush1.msra.mxu0 0.0
    %837 = vmatprep.subr.mxu0 0.0
    %838 = vmatpush1.msra.mxu0 0.0
    %839 = vmatprep.subr.mxu0 0.0
    %840 = vmatpush1.msra.mxu0 0.0
    %841 = vmatprep.subr.mxu0 0.0
    %842 = vmatpush1.msra.mxu0 0.0
    %843 = vmatprep.subr.mxu0 0.0
    %844 = vmatpush1.msra.mxu0 0.0
    %845 = vmatprep.subr.mxu0 0.0
    %846 = vmatpush1.msra.mxu0 0.0
    %847 = vmatprep.subr.mxu0 0.0
    %848 = vmatpush1.msra.mxu0 0.0
    %849 = vmatprep.subr.mxu0 0.0
    %850 = vmatpush1.msra.mxu0 0.0
    %851 = vmatprep.subr.mxu0 0.0
    %852 = vmatpush1.msra.mxu0 0.0
    %853 = vmatprep.subr.mxu0 0.0
    %854 = vmatpush1.msra.mxu0 0.0
    %855 = vmatprep.subr.mxu0 0.0
    %856 = vmatpush1.msra.mxu0 0.0
    %857 = vmatprep.mubr.f32.mxu0 0.0
    %858 = vmatmul.mubr.f32.gmra.mrb[0].mxu0 %v774
    %v859 = vpop.f32.mrb[0].mxu0
    %v860 = vadd.f32 0.0, %v859
    %v861 = vpop.f32.mrb[0].mxu0
    %862 = vmatprep.mubr.f32.mxu0 0.0
    %863 = vmatmul.mubr.f32.gmra.mrb[0].mxu0 %v775
    %v864 = vpop.f32.mrb[0].mxu0
    %v865 = vadd.f32 0.0, %v864
    %v866 = vpop.f32.mrb[0].mxu0
    %867 = vdwg.mxu0
    %s868 = scalar_lea.vmem %s3, 4
    %v869 = vld [vmem:[%s868] sm:$0x1]
    %v871 = vlaneseq
    %v872 = vshrl.u32 %v871, 7
    %v873 = vsub.s32 0, %v872
    %v874 = vrot.slane %v869, %v873
    %876 = vmatprep.subr.mxu0 0.0
    %877 = vmatpush1.msra.mxu0 %v860
    %878 = vmatprep.subr.mxu0 0.0
    %879 = vmatpush1.msra.mxu0 %v865
    %880 = vmatprep.subr.mxu0 0.0
    %881 = vmatpush1.msra.mxu0 0.0
    %882 = vmatprep.subr.mxu0 0.0
    %883 = vmatpush1.msra.mxu0 0.0
    %884 = vmatprep.subr.mxu0 0.0
    %885 = vmatpush1.msra.mxu0 0.0
    %886 = vmatprep.subr.mxu0 0.0
    %887 = vmatpush1.msra.mxu0 0.0
    %888 = vmatprep.subr.mxu0 0.0
    %889 = vmatpush1.msra.mxu0 0.0
    %890 = vmatprep.subr.mxu0 0.0
    %891 = vmatpush1.msra.mxu0 0.0
    %892 = vmatprep.subr.mxu0 0.0
    %893 = vmatpush1.msra.mxu0 0.0
    %894 = vmatprep.subr.mxu0 0.0
    %895 = vmatpush1.msra.mxu0 0.0
    %896 = vmatprep.subr.mxu0 0.0
    %897 = vmatpush1.msra.mxu0 0.0
    %898 = vmatprep.subr.mxu0 0.0
    %899 = vmatpush1.msra.mxu0 0.0
    %900 = vmatprep.subr.mxu0 0.0
    %901 = vmatpush1.msra.mxu0 0.0
    %902 = vmatprep.subr.mxu0 0.0
    %903 = vmatpush1.msra.mxu0 0.0
    %904 = vmatprep.subr.mxu0 0.0
    %905 = vmatpush1.msra.mxu0 0.0
    %906 = vmatprep.subr.mxu0 0.0
    %907 = vmatpush1.msra.mxu0 0.0
    %908 = vmatprep.subr.mxu0 0.0
    %909 = vmatpush1.msra.mxu0 0.0
    %910 = vmatprep.subr.mxu0 0.0
    %911 = vmatpush1.msra.mxu0 0.0
    %912 = vmatprep.subr.mxu0 0.0
    %913 = vmatpush1.msra.mxu0 0.0
    %914 = vmatprep.subr.mxu0 0.0
    %915 = vmatpush1.msra.mxu0 0.0
    %916 = vmatprep.subr.mxu0 0.0
    %917 = vmatpush1.msra.mxu0 0.0
    %918 = vmatprep.subr.mxu0 0.0
    %919 = vmatpush1.msra.mxu0 0.0
    %920 = vmatprep.subr.mxu0 0.0
    %921 = vmatpush1.msra.mxu0 0.0
    %922 = vmatprep.subr.mxu0 0.0
    %923 = vmatpush1.msra.mxu0 0.0
    %924 = vmatprep.subr.mxu0 0.0
    %925 = vmatpush1.msra.mxu0 0.0
    %926 = vmatprep.subr.mxu0 0.0
    %927 = vmatpush1.msra.mxu0 0.0
    %928 = vmatprep.subr.mxu0 0.0
    %929 = vmatpush1.msra.mxu0 0.0
    %930 = vmatprep.subr.mxu0 0.0
    %931 = vmatpush1.msra.mxu0 0.0
    %932 = vmatprep.subr.mxu0 0.0
    %933 = vmatpush1.msra.mxu0 0.0
    %934 = vmatprep.subr.mxu0 0.0
    %935 = vmatpush1.msra.mxu0 0.0
    %936 = vmatprep.subr.mxu0 0.0
    %937 = vmatpush1.msra.mxu0 0.0
    %938 = vmatprep.subr.mxu0 0.0
    %939 = vmatpush1.msra.mxu0 0.0
    %940 = vmatprep.mubr.f32.mxu0 0.0
    %941 = vmatmul.mubr.f32.gmra.mrb[0].mxu0 %v163
    %v942 = vpop.f32.mrb[0].mxu0
    %v943 = vadd.f32 %v874, %v942
    %v944 = vpop.f32.mrb[0].mxu0
    %945 = vmatprep.mubr.f32.mxu0 0.0
    %946 = vmatmul.mubr.f32.gmra.mrb[0].mxu0 %v166
    %v947 = vpop.f32.mrb[0].mxu0
    %v948 = vadd.f32 %v874, %v947
    %v949 = vpop.f32.mrb[0].mxu0
    %950 = vdwg.mxu0
    %951 = vst [vmem:[#allocation8] sm:$0xff] %v943
    %952 = vst [vmem:[#allocation8 + $0x8] sm:$0xff] %v948
    // Predicated region
    $region30: #{tpu_custom_call.1} parent=1 // pred_check
      _
    $region31: #{tpu_custom_call.1} parent=1 // pred_check_branch
      %954 = sbr.rel (0) target = $region33
    $region32: #{tpu_custom_call.1} parent=1 // pred_region
      %s956 = ssub.s32 256, 256
      %957 = vsyncadd [#allocation4], %s956
      %s958 = sshll.u32 [#allocation8], 4
      %s959 = int_to_ptr.vmem [resolvable:$true] %s958
      %964 = dma.vmem_to_hbm [thread:$0]  %s959, 256, %s4, [#allocation4], 128, 128, 8
    $region33: #{tpu_custom_call.1} parent=1 // pred_fallthru
      _
    // Predicated region
    $region34: #{tpu_custom_call.1} parent=1 // pred_check
      _
    $region35: #{tpu_custom_call.1} parent=1 // pred_check_branch
      %966 = sbr.rel (0) target = $region37
    $region36: #{tpu_custom_call.1} parent=1 // pred_region
      %967 = dma.done [#allocation4], 256
    $region37: #{tpu_custom_call.1} parent=1 // pred_fallthru
      _
    %968 = vsyncpa [#allocation3], 1
    %969 = vsyncpa [#allocation6], 1
    %970 = vsyncpa [#allocation4], 1

</llo_original>
